<compile_context>
chip_gen: v6e
topology: v6e:2x2x1
jax: 0.10.0
libtpu: 0.0.40
codegen_flags: <defaults>
</compile_context>

<pallas_src>
import functools

import jax
import jax.numpy as jnp
from jax import lax
from jax.experimental import pallas as pl
from jax.experimental.pallas import tpu as pltpu

LN_EPS = 1e-12


# ------------------------------ Pallas kernel ------------------------------

def _self_output_kernel(x_ref, res_ref, w_ref, b_ref, g_ref, beta_ref, o_ref,
                        *, eps):
    # x_ref / res_ref: (tm, H) bf16 row tiles; w_ref: (H, H) bf16;
    # b/g/beta: (1, H) f32; o_ref: (tm, H) out_dtype.

    # Dense projection on the MXU: bf16 operands, f32 accumulation.
    dense = jnp.dot(x_ref[...], w_ref[...],
                    preferred_element_type=jnp.float32) + b_ref[0]

    # dropout == identity (eval mode), then residual add in f32.
    # TODO(synk): training-mode dropout (hidden_dropout_prob) would need
    # pltpu.prng_seed / prng_random_bits masking; omitted (forward/eval).
    h = dense + res_ref[...].astype(jnp.float32)

    # BertLayerNorm (biased variance, eps inside the sqrt).  Fused statistics:
    # E[x] and E[x^2] from the same pass over h (avoids the serial
    # mean -> subtract -> mean-of-squares reduction chain); rsqrt -> EUP slot.
    mean = jnp.mean(h, axis=-1, keepdims=True)
    msq = jnp.mean(h * h, axis=-1, keepdims=True)
    var = jnp.maximum(msq - mean * mean, 0.0)
    xn = (h - mean) * lax.rsqrt(var + eps)
    o_ref[...] = (g_ref[0] * xn + beta_ref[0]).astype(o_ref.dtype)


# ------------------------------ host wrapper -------------------------------

def _round_up(n, m):
    return (n + m - 1) // m * m


def _pick_row_tile(n):
    # 256-512 rows balances v7x's 2 TensorCores / 64 MiB VMEM while still
    # amortizing the ~0.35 us per-grid-step overhead; small problems use a
    # single sublane-aligned tile.
    if n >= 512:
        return 512
    if n >= 256:
        return 256
    return max(8, _round_up(n, 8))


def bert_self_output_pallas(hidden_states, input_tensor, weight, bias, gamma,
                            beta, *, eps=LN_EPS, out_dtype=None):
    """BertSelfOutput.forward.

    hidden_states, input_tensor: (..., H)
    weight: (H, H) stored as (in, out);  bias/gamma/beta: (H,) or (1, H).
    out_dtype: output dtype (defaults to hidden_states.dtype; use bf16 to
               halve the writeback stream when the consumer accepts it).
    """
    orig_shape = hidden_states.shape
    H = orig_shape[-1]
    out_dtype = hidden_states.dtype if out_dtype is None else out_dtype

    # Stream the two activation tensors as bf16 (kernel is HBM-bound at BERT
    # sizes); f32 math happens inside the kernel.
    x2 = hidden_states.reshape(-1, H).astype(jnp.bfloat16)
    r2 = input_tensor.reshape(-1, H).astype(jnp.bfloat16)
    N = x2.shape[0]

    w_bf16 = weight.astype(jnp.bfloat16)
    b2 = bias.reshape(1, H).astype(jnp.float32)
    g2 = gamma.reshape(1, H).astype(jnp.float32)
    be2 = beta.reshape(1, H).astype(jnp.float32)

    tm = _pick_row_tile(N)
    n_pad = _round_up(N, tm)
    if n_pad != N:
        # Pad to a whole number of row tiles (padded rows are harmless: with
        # eps > 0 they normalize to beta, never NaN) and slice them off after.
        x2 = jnp.pad(x2, ((0, n_pad - N), (0, 0)))
        r2 = jnp.pad(r2, ((0, n_pad - N), (0, 0)))
    grid = (n_pad // tm,)

    row_spec = pl.BlockSpec((tm, H), lambda i: (i, 0))
    # Constant index_map -> the block never changes; a single buffer suffices.
    w_spec = pl.BlockSpec((H, H), lambda i: (0, 0), pipeline_mode=pl.Buffered(1))
    vec_spec = pl.BlockSpec((1, H), lambda i: (0, 0), pipeline_mode=pl.Buffered(1))

    out_bytes = jnp.dtype(out_dtype).itemsize
    # Resident VMEM: double-buffered row tiles (x/res bf16 + out), single
    # bf16 weight buffer, f32 vectors, plus scratch/pipelining headroom;
    # clamped to this generation's physical VMEM (64 MiB/TC on v7x).
    try:
        vmem_cap = int(pltpu.get_tpu_info().vmem_capacity_bytes)
    except Exception:  # pragma: no cover - conservative fallback
        vmem_cap = 64 << 20
    tile_bytes = 2 * tm * H * (2 + 2 + out_bytes)
    resident = tile_bytes + H * H * 2 + 3 * H * 4
    vmem_limit = int(min(resident + (16 << 20), vmem_cap))

    cost = pl.CostEstimate(
        flops=2 * N * H * H + 10 * N * H,            # dense + residual/LN
        transcendentals=N,                           # one rsqrt per row
        bytes_accessed=N * H * (2 + 2 + out_bytes)   # bf16 x, bf16 res, out
        + H * H * 2 + 3 * H * 4,                     # bf16 weight + f32 vecs
    )

    kernel = functools.partial(_self_output_kernel, eps=eps)
    out = pl.pallas_call(
        kernel,
        out_shape=jax.ShapeDtypeStruct((n_pad, H), out_dtype),
        grid_spec=pltpu.PrefetchScalarGridSpec(
            num_scalar_prefetch=0,
            grid=grid,
            in_specs=[row_spec, row_spec, w_spec, vec_spec, vec_spec, vec_spec],
            out_specs=pl.BlockSpec((tm, H), lambda i: (i, 0)),
        ),
        compiler_params=pltpu.CompilerParams(
            dimension_semantics=("parallel",),
            vmem_limit_bytes=vmem_limit),
        cost_estimate=cost,
    )(x2, r2, w_bf16, b2, g2, be2)

    if n_pad != N:
        out = out[:N]
    return out.reshape(orig_shape)


# ----------------------- pure-JAX reference (checking) ---------------------

def bert_self_output_ref(hidden_states, input_tensor, weight, bias, gamma,
                         beta, eps=LN_EPS):
    h = hidden_states @ weight + bias          # dense (dropout = identity)
    h = h + input_tensor                       # residual
    u = h.mean(-1, keepdims=True)
    s = ((h - u) ** 2).mean(-1, keepdims=True)
    xn = (h - u) / jnp.sqrt(s + eps)
    return gamma * xn + beta


# ----------------------------------- main -----------------------------------

if __name__ == "__main__":
    B, S, H = 2, 8, 32

    key = jax.random.PRNGKey(0)
    k1, k2, k3, k4 = jax.random.split(key, 4)
    hidden_states = jax.random.normal(k1, (B, S, H), dtype=jnp.float32)
    input_tensor = jax.random.normal(k2, (B, S, H), dtype=jnp.float32)
    weight = (0.02 * jax.random.normal(k3, (H, H))).astype(jnp.float32)
    bias = (0.02 * jax.random.normal(k4, (H,))).astype(jnp.float32)
    gamma = jnp.ones((H,), jnp.float32)
    beta = jnp.zeros((H,), jnp.float32)

    out = bert_self_output_pallas(hidden_states, input_tensor, weight, bias,
                                  gamma, beta)
    out = jax.block_until_ready(out)

    ref = bert_self_output_ref(hidden_states, input_tensor, weight, bias,
                               gamma, beta)
    err = float(jnp.max(jnp.abs(out - ref)))
    # bf16-streamed activations/residual + bf16 MXU operands (f32 accumulate)
    # -> slightly looser tolerance vs the f32 reference.
    assert err < 3e-2, f"mismatch vs reference: {err}"
    print("KERNEL_OK")
</pallas_src>

<mosaic_0001>
module attributes {stable_mosaic.version = 11 : i64} {
  func.func @_self_output_kernel(%arg0: i32, %arg1: memref<16x32xbf16, #tpu.memory_space<vmem>>, %arg2: memref<16x32xbf16, #tpu.memory_space<vmem>>, %arg3: memref<32x32xbf16, #tpu.memory_space<vmem>>, %arg4: memref<1x32xf32, #tpu.memory_space<vmem>>, %arg5: memref<1x32xf32, #tpu.memory_space<vmem>>, %arg6: memref<1x32xf32, #tpu.memory_space<vmem>>, %arg7: memref<16x32xf32, #tpu.memory_space<vmem>>) attributes {dimension_semantics = [#tpu.dimension_semantics<parallel>], iteration_bounds = array<i64: 1>, scalar_prefetch = 0 : i64, scratch_operands = 0 : i64, tpu.core_type = #tpu.core_type<tc>, window_params = [{transform_indices = @transform_0, window_bounds = array<i64: 16, 32>}, {transform_indices = @transform_1, window_bounds = array<i64: 16, 32>}, {pipeline_mode = #tpu.pipeline_mode<synchronous>, transform_indices = @transform_2, window_bounds = array<i64: 32, 32>}, {pipeline_mode = #tpu.pipeline_mode<synchronous>, transform_indices = @transform_3, window_bounds = array<i64: 1, 32>}, {pipeline_mode = #tpu.pipeline_mode<synchronous>, transform_indices = @transform_4, window_bounds = array<i64: 1, 32>}, {pipeline_mode = #tpu.pipeline_mode<synchronous>, transform_indices = @transform_5, window_bounds = array<i64: 1, 32>}, {transform_indices = @transform_6, window_bounds = array<i64: 16, 32>}]} {
    %c0 = arith.constant 0 : index
    %c0_0 = arith.constant 0 : index
    %0 = vector.load %arg1[%c0, %c0_0] : memref<16x32xbf16, #tpu.memory_space<vmem>>, vector<16x32xbf16>
    %c0_1 = arith.constant 0 : index
    %c0_2 = arith.constant 0 : index
    %1 = vector.load %arg3[%c0_1, %c0_2] : memref<32x32xbf16, #tpu.memory_space<vmem>>, vector<32x32xbf16>
    %cst = arith.constant dense<0.000000e+00> : vector<16x32xf32>
    %2 = tpu.matmul %0, %1, %cst {dimension_numbers = #tpu.dot_dimension_numbers<[1], [0], [0], [1], [0, 0, 1, 1], [], []>} : vector<16x32xbf16>, vector<32x32xbf16>, vector<16x32xf32> -> vector<16x32xf32>
    %c0_3 = arith.constant 0 : index
    %c0_4 = arith.constant 0 : index
    %3 = vector.load %arg4[%c0_3, %c0_4] : memref<1x32xf32, #tpu.memory_space<vmem>>, vector<1x32xf32>
    %4 = vector.shape_cast %3 : vector<1x32xf32> to vector<32xf32>
    %5 = vector.shape_cast %4 : vector<32xf32> to vector<1x32xf32>
    %6 = vector.broadcast %5 : vector<1x32xf32> to vector<16x32xf32>
    %7 = arith.addf %2, %6 : vector<16x32xf32>
    %c0_5 = arith.constant 0 : index
    %c0_6 = arith.constant 0 : index
    %8 = vector.load %arg2[%c0_5, %c0_6] : memref<16x32xbf16, #tpu.memory_space<vmem>>, vector<16x32xbf16>
    %9 = arith.extf %8 : vector<16x32xbf16> to vector<16x32xf32>
    %10 = arith.addf %7, %9 : vector<16x32xf32>
    %cst_7 = arith.constant dense<0.000000e+00> : vector<16xf32>
    %11 = vector.multi_reduction <add>, %10, %cst_7 [1] : vector<16x32xf32> to vector<16xf32>
    %12 = vector.shape_cast %11 : vector<16xf32> to vector<16x1xf32>
    %cst_8 = arith.constant 3.200000e+01 : f32
    %13 = vector.broadcast %cst_8 : f32 to vector<16x1xf32>
    %14 = arith.divf %12, %13 : vector<16x1xf32>
    %15 = arith.mulf %10, %10 : vector<16x32xf32>
    %cst_9 = arith.constant dense<0.000000e+00> : vector<16xf32>
    %16 = vector.multi_reduction <add>, %15, %cst_9 [1] : vector<16x32xf32> to vector<16xf32>
    %17 = vector.shape_cast %16 : vector<16xf32> to vector<16x1xf32>
    %cst_10 = arith.constant 3.200000e+01 : f32
    %18 = vector.broadcast %cst_10 : f32 to vector<16x1xf32>
    %19 = arith.divf %17, %18 : vector<16x1xf32>
    %20 = arith.mulf %14, %14 : vector<16x1xf32>
    %21 = arith.subf %19, %20 : vector<16x1xf32>
    %cst_11 = arith.constant 0.000000e+00 : f32
    %22 = vector.broadcast %cst_11 : f32 to vector<16x1xf32>
    %23 = arith.maximumf %21, %22 : vector<16x1xf32>
    %24 = vector.broadcast %14 : vector<16x1xf32> to vector<16x32xf32>
    %25 = arith.subf %10, %24 : vector<16x32xf32>
    %cst_12 = arith.constant 9.99999996E-13 : f32
    %26 = vector.broadcast %cst_12 : f32 to vector<16x1xf32>
    %27 = arith.addf %23, %26 : vector<16x1xf32>
    %28 = math.rsqrt %27 : vector<16x1xf32>
    %29 = vector.broadcast %28 : vector<16x1xf32> to vector<16x32xf32>
    %30 = arith.mulf %25, %29 : vector<16x32xf32>
    %c0_13 = arith.constant 0 : index
    %c0_14 = arith.constant 0 : index
    %31 = vector.load %arg5[%c0_13, %c0_14] : memref<1x32xf32, #tpu.memory_space<vmem>>, vector<1x32xf32>
    %32 = vector.shape_cast %31 : vector<1x32xf32> to vector<32xf32>
    %33 = vector.shape_cast %32 : vector<32xf32> to vector<1x32xf32>
    %34 = vector.broadcast %33 : vector<1x32xf32> to vector<16x32xf32>
    %35 = arith.mulf %34, %30 : vector<16x32xf32>
    %c0_15 = arith.constant 0 : index
    %c0_16 = arith.constant 0 : index
    %36 = vector.load %arg6[%c0_15, %c0_16] : memref<1x32xf32, #tpu.memory_space<vmem>>, vector<1x32xf32>
    %37 = vector.shape_cast %36 : vector<1x32xf32> to vector<32xf32>
    %38 = vector.shape_cast %37 : vector<32xf32> to vector<1x32xf32>
    %39 = vector.broadcast %38 : vector<1x32xf32> to vector<16x32xf32>
    %40 = arith.addf %35, %39 : vector<16x32xf32>
    %c0_17 = arith.constant 0 : index
    %c0_18 = arith.constant 0 : index
    %41 = vector.load %arg7[%c0_17, %c0_18] : memref<16x32xf32, #tpu.memory_space<vmem>>, vector<16x32xf32>
    tpu.vector_store %arg7[%c0_17, %c0_18], %40 {strides = array<i32>} : memref<16x32xf32, #tpu.memory_space<vmem>>, vector<16x32xf32>,
    return
  }
  func.func @transform_0(%arg0: i32) -> (i32, i32) {
    %c0_i32 = arith.constant 0 : i32
    %c0_i32_0 = arith.constant 0 : i32
    return %arg0, %c0_i32 : i32, i32
  }
  func.func @transform_1(%arg0: i32) -> (i32, i32) {
    %c0_i32 = arith.constant 0 : i32
    %c0_i32_0 = arith.constant 0 : i32
    return %arg0, %c0_i32 : i32, i32
  }
  func.func @transform_2(%arg0: i32) -> (i32, i32) {
    %c0_i32 = arith.constant 0 : i32
    %c0_i32_0 = arith.constant 0 : i32
    %c0_i32_1 = arith.constant 0 : i32
    return %c0_i32, %c0_i32_0 : i32, i32
  }
  func.func @transform_3(%arg0: i32) -> (i32, i32) {
    %c0_i32 = arith.constant 0 : i32
    %c0_i32_0 = arith.constant 0 : i32
    %c0_i32_1 = arith.constant 0 : i32
    return %c0_i32, %c0_i32_0 : i32, i32
  }
  func.func @transform_4(%arg0: i32) -> (i32, i32) {
    %c0_i32 = arith.constant 0 : i32
    %c0_i32_0 = arith.constant 0 : i32
    %c0_i32_1 = arith.constant 0 : i32
    return %c0_i32, %c0_i32_0 : i32, i32
  }
  func.func @transform_5(%arg0: i32) -> (i32, i32) {
    %c0_i32 = arith.constant 0 : i32
    %c0_i32_0 = arith.constant 0 : i32
    %c0_i32_1 = arith.constant 0 : i32
    return %c0_i32, %c0_i32_0 : i32, i32
  }
  func.func @transform_6(%arg0: i32) -> (i32, i32) {
    %c0_i32 = arith.constant 0 : i32
    %c0_i32_0 = arith.constant 0 : i32
    return %arg0, %c0_i32 : i32, i32
  }
}

</mosaic_0001>

<llo_original>
// kernel: tpu_custom_call.1
$region0: #{tpu_custom_call.1}
  #allocation0 [shape = 'u32[]', space=smem, size = 0x4, offset = 0x4, fixed_abs, tag = 'smem constant byte address 0x4 - core index']
  #allocation1 [shape = 'u32[144,128]{1,0:T(1,128)}', space=vmem, size = 0x12000, scoped, tag = 'internal scratch']
  %s0 = inlined_call_operand.hbm [shape: bf16[16,32], index: 0, kind: input, shape index: {}]
  %s1 = inlined_call_operand.hbm [shape: bf16[16,32], index: 1, kind: input, shape index: {}]
  %s2 = inlined_call_operand.hbm [shape: bf16[32,32], index: 2, kind: input, shape index: {}]
  %s3 = inlined_call_operand.vmem [shape: f32[1,32], index: 3, kind: input, shape index: {}]
  %s4 = inlined_call_operand.vmem [shape: f32[1,32], index: 4, kind: input, shape index: {}]
  %s5 = inlined_call_operand.vmem [shape: f32[1,32], index: 5, kind: input, shape index: {}]
  %s6 = inlined_call_operand.hbm [shape: f32[16,32], index: 6, kind: output, shape index: {}]
  %s7 = sld [smem:[#allocation0]]
  $region46: #{tpu_custom_call.1} parent=0
    _
  %s9 = ssub.s32 1, %s7
  %s10 = scalar_select 0, %s9, %s7
  $region1: #{tpu_custom_call.1} parent=0
    #allocation2 [shape = 'u8[4096]{0}', space=vmem, size = 0x1000, scoped, tag = 'input window, operand 0, single buffered']
    #allocation3 [shape = 's32[1]{0}', space=sflag, size = 0x4, scoped, tag = 'scoped memory for tpu_custom_call.1']
    #allocation4 [shape = 's32[1]{0}', space=sflag, size = 0x4, scoped, tag = 'scoped memory for tpu_custom_call.1']
    #allocation5 [shape = 'u8[4096]{0}', space=vmem, size = 0x1000, scoped, tag = 'input window, operand 1, single buffered']
    #allocation6 [shape = 's32[1]{0}', space=sflag, size = 0x4, scoped, tag = 'scoped memory for tpu_custom_call.1']
    #allocation7 [shape = 'u8[8192]{0}', space=vmem, size = 0x2000, scoped, tag = 'input window, operand 2, single buffered']
    #allocation8 [shape = 'u8[8192]{0}', space=vmem, size = 0x2000, scoped, tag = 'output window, operand 0, single buffered']
    %11 = vsyncpa [#allocation3], 0
    %12 = vsyncpa [#allocation6], 0
    %13 = vsyncpa [#allocation4], 0
    // Predicated region
    $region2: #{tpu_custom_call.1} parent=1 // pred_check
      _
    $region3: #{tpu_custom_call.1} parent=1 // pred_check_branch
      %15 = sbr.rel (0) target = $region5
    $region4: #{tpu_custom_call.1} parent=1 // pred_region
      %s17 = ssub.s32 128, 128
      %18 = vsyncadd [#allocation3], %s17
      %s19 = sshll.u32 [#allocation2], 4
      %s20 = int_to_ptr.vmem [resolvable:$true] %s19
      %25 = dma.hbm_to_vmem [thread:$0]  %s0, 128, %s20, [#allocation3], 64, 64, 4
    $region5: #{tpu_custom_call.1} parent=1 // pred_fallthru
      _
    // Predicated region
    $region6: #{tpu_custom_call.1} parent=1 // pred_check
      _
    $region7: #{tpu_custom_call.1} parent=1 // pred_check_branch
      %27 = sbr.rel (0) target = $region9
    $region8: #{tpu_custom_call.1} parent=1 // pred_region
      %s29 = ssub.s32 128, 128
      %30 = vsyncadd [#allocation6], %s29
      %s31 = sshll.u32 [#allocation5], 4
      %s32 = int_to_ptr.vmem [resolvable:$true] %s31
      %37 = dma.hbm_to_vmem [thread:$0]  %s1, 128, %s32, [#allocation6], 64, 64, 4
    $region9: #{tpu_custom_call.1} parent=1 // pred_fallthru
      _
    // Predicated region
    $region10: #{tpu_custom_call.1} parent=1 // pred_check
      _
    $region11: #{tpu_custom_call.1} parent=1 // pred_check_branch
      %39 = sbr.rel (0) target = $region13
    $region12: #{tpu_custom_call.1} parent=1 // pred_region
      %s41 = ssub.s32 256, 256
      %42 = vsyncadd [#allocation6], %s41
      %s43 = sshll.u32 [#allocation7], 4
      %s44 = int_to_ptr.vmem [resolvable:$true] %s43
      %49 = dma.hbm_to_vmem [thread:$0]  %s2, 256, %s44, [#allocation6], 64, 64, 4
    $region13: #{tpu_custom_call.1} parent=1 // pred_fallthru
      _
    // Predicated region
    $region14: #{tpu_custom_call.1} parent=1 // pred_check
      _
    $region15: #{tpu_custom_call.1} parent=1 // pred_check_branch
      %51 = sbr.rel (0) target = $region17
    $region16: #{tpu_custom_call.1} parent=1 // pred_region
      _
    $region17: #{tpu_custom_call.1} parent=1 // pred_fallthru
      _
    // Predicated region
    $region18: #{tpu_custom_call.1} parent=1 // pred_check
      _
    $region19: #{tpu_custom_call.1} parent=1 // pred_check_branch
      %53 = sbr.rel (0) target = $region21
    $region20: #{tpu_custom_call.1} parent=1 // pred_region
      _
    $region21: #{tpu_custom_call.1} parent=1 // pred_fallthru
      _
    // Predicated region
    $region22: #{tpu_custom_call.1} parent=1 // pred_check
      _
    $region23: #{tpu_custom_call.1} parent=1 // pred_check_branch
      %55 = sbr.rel (0) target = $region25
    $region24: #{tpu_custom_call.1} parent=1 // pred_region
      _
    $region25: #{tpu_custom_call.1} parent=1 // pred_fallthru
      _
    // Predicated region
    $region26: #{tpu_custom_call.1} parent=1 // pred_check
      _
    $region27: #{tpu_custom_call.1} parent=1 // pred_check_branch
      %57 = sbr.rel (0) target = $region29
    $region28: #{tpu_custom_call.1} parent=1 // pred_region
      %58 = dma.done [#allocation3], 128
    $region29: #{tpu_custom_call.1} parent=1 // pred_fallthru
      _
    // Predicated region
    $region30: #{tpu_custom_call.1} parent=1 // pred_check
      _
    $region31: #{tpu_custom_call.1} parent=1 // pred_check_branch
      %60 = sbr.rel (0) target = $region33
    $region32: #{tpu_custom_call.1} parent=1 // pred_region
      %61 = dma.done [#allocation6], 128
    $region33: #{tpu_custom_call.1} parent=1 // pred_fallthru
      _
    // Predicated region
    $region34: #{tpu_custom_call.1} parent=1 // pred_check
      _
    $region35: #{tpu_custom_call.1} parent=1 // pred_check_branch
      %63 = sbr.rel (0) target = $region37
    $region36: #{tpu_custom_call.1} parent=1 // pred_region
      %64 = dma.done [#allocation6], 256
    $region37: #{tpu_custom_call.1} parent=1 // pred_fallthru
      _
    %v66 = vld [vmem:[#allocation2] sm:$0xf]
    %v67 = vld [vmem:[#allocation2 + $0x4] sm:$0xf]
    %v68 = vld [vmem:[#allocation7] sm:$0xf]
    %v69 = vld [vmem:[#allocation7 + $0x4] sm:$0xf]
    %v70 = vld [vmem:[#allocation7 + $0x8] sm:$0xf]
    %v71 = vld [vmem:[#allocation7 + $0xc] sm:$0xf]
    %v72 = vld [vmem:[%s3] sm:$0x1]
    %v74 = vlaneseq
    %v75 = vshrl.u32 %v74, 7
    %v76 = vsub.s32 0, %v75
    %v77 = vrot.slane %v72, %v76
    %v81 = vunpack.c.l.b16 %v66
    %v82 = vunpack.c.l.b16 %v67
    %v83 = vpack.c.b16 %v82, %v81
    %v88 = vunpack.c.l.b16 %v68
    %v89 = vunpack.c.l.b16 %v69
    %v90 = vunpack.c.l.b16 %v70
    %v91 = vunpack.c.l.b16 %v71
    %v92 = vpack.c.b16 %v89, %v88
    %v93 = vpack.c.b16 %v91, %v90
    %vm96 = vcmask 261120
    %v98 = vsel %vm96, %v83, 0
    %100 = vmatprep.subr.bf16.mxu0 0
    %101 = vmatpush1.bf16.msra.mxu0 0
    %102 = vmatprep.subr.bf16.mxu0 0
    %103 = vmatpush1.bf16.msra.mxu0 0
    %104 = vmatprep.subr.bf16.mxu0 0
    %105 = vmatpush1.bf16.msra.mxu0 0
    %106 = vmatprep.subr.bf16.mxu0 0
    %107 = vmatpush1.bf16.msra.mxu0 0
    %108 = vmatprep.subr.bf16.mxu0 0
    %109 = vmatpush1.bf16.msra.mxu0 0
    %110 = vmatprep.subr.bf16.mxu0 0
    %111 = vmatpush1.bf16.msra.mxu0 0
    %112 = vmatprep.subr.bf16.mxu0 0
    %113 = vmatpush1.bf16.msra.mxu0 %v93
    %114 = vmatprep.subr.bf16.mxu0 0
    %115 = vmatpush1.bf16.msra.mxu0 %v92
    %116 = vmatprep.subr.bf16.mxu0 0
    %117 = vmatpush2.bf16.msra.mxu0 0
    %118 = vmatprep.subr.bf16.mxu0 0
    %119 = vmatpush2.bf16.msra.mxu0 0
    %120 = vmatprep.subr.bf16.mxu0 0
    %121 = vmatpush2.bf16.msra.mxu0 0
    %122 = vmatprep.subr.bf16.mxu0 0
    %123 = vmatpush2.bf16.msra.mxu0 0
    %124 = vmatprep.subr.bf16.mxu0 0
    %125 = vmatpush2.bf16.msra.mxu0 0
    %126 = vmatprep.subr.bf16.mxu0 0
    %127 = vmatpush2.bf16.msra.mxu0 0
    %128 = vmatprep.subr.bf16.mxu0 0
    %129 = vmatpush2.bf16.msra.mxu0 0
    %130 = vmatprep.subr.bf16.mxu0 0
    %131 = vmatpush2.bf16.msra.mxu0 0
    %132 = vmatprep.mubr.bf16.mxu0 0
    %133 = vmatmul.mubr.bf16.gmra.mxu0 %v98
    %v134 = vpop.f32.mrf.mxu0
    %v135 = vadd.f32 %v77, %v134
    %v136 = vpop.f32.mrf.mxu0
    %v137 = vpop.f32.mrf.mxu0
    %v138 = vadd.f32 %v77, %v137
    %v139 = vpop.f32.mrf.mxu0
    %140 = vdwg.mxu0
    %v141 = vld [vmem:[#allocation5] sm:$0xf]
    %v142 = vld [vmem:[#allocation5 + $0x4] sm:$0xf]
    %v143 = vunpack.c.l.bf16 %v141
    %v144 = vunpack.c.l.bf16 %v142
    %v145 = vadd.f32 %v135, %v143
    %v146 = vadd.f32 %v138, %v144
    %v147 = vsel %vm96, %v145, 0.0
    %148 = vadd.xlane.f32.xlu0 %v147
    %v149 = vpop.xlane.xlu0 %148
    %v150 = vsel %vm96, %v146, 0.0
    %151 = vadd.xlane.f32.xlu0 %v150
    %v152 = vpop.xlane.xlu0 %151
    %v153 = vrcp.pop 32.0
    %v154 = vmul.f32 %v149, %v153
    %v155 = vmul.f32 %v152, %v153
    %v156 = vmul.f32 %v145, %v145
    %v157 = vmul.f32 %v146, %v146
    %v158 = vsel %vm96, %v156, 0.0
    %159 = vadd.xlane.f32.xlu0 %v158
    %v160 = vpop.xlane.xlu0 %159
    %v161 = vsel %vm96, %v157, 0.0
    %162 = vadd.xlane.f32.xlu0 %v161
    %v163 = vpop.xlane.xlu0 %162
    %v164 = vmul.f32 %v160, %v153
    %v165 = vmul.f32 %v163, %v153
    %v166 = vmul.f32 %v154, %v154
    %v167 = vmul.f32 %v155, %v155
    %v168 = vsub.f32 %v164, %v166
    %v169 = vsub.f32 %v165, %v167
    %v170 = vmax.f32 %v168, 0.0
    %v171 = vmax.f32 %v169, 0.0
    %v172 = vsub.f32 %v145, %v154
    %v173 = vsub.f32 %v146, %v155
    %v174 = vadd.f32 %v170, 1e-12
    %v175 = vadd.f32 %v171, 1e-12
    %v176 = vrsqrt.pop %v174
    %v177 = vrsqrt.pop %v175
    %v178 = vmul.f32 %v172, %v176
    %v179 = vmul.f32 %v173, %v177
    %v180 = vld [vmem:[%s4] sm:$0x1]
    %v182 = vlaneseq
    %v183 = vshrl.u32 %v182, 7
    %v184 = vsub.s32 0, %v183
    %v185 = vrot.slane %v180, %v184
    %v187 = vmul.f32 %v185, %v178
    %v188 = vmul.f32 %v185, %v179
    %v189 = vld [vmem:[%s5] sm:$0x1]
    %v191 = vlaneseq
    %v192 = vshrl.u32 %v191, 7
    %v193 = vsub.s32 0, %v192
    %v194 = vrot.slane %v189, %v193
    %v196 = vadd.f32 %v187, %v194
    %v197 = vadd.f32 %v188, %v194
    %198 = vst.msk [vmem:[#allocation8] sm:$0xff] %vm96, %v196
    %199 = vst.msk [vmem:[#allocation8 + $0x8] sm:$0xff] %vm96, %v197
    // Predicated region
    $region38: #{tpu_custom_call.1} parent=1 // pred_check
      _
    $region39: #{tpu_custom_call.1} parent=1 // pred_check_branch
      %201 = sbr.rel (0) target = $region41
    $region40: #{tpu_custom_call.1} parent=1 // pred_region
      %s203 = ssub.s32 256, 256
      %204 = vsyncadd [#allocation4], %s203
      %s205 = sshll.u32 [#allocation8], 4
      %s206 = int_to_ptr.vmem [resolvable:$true] %s205
      %211 = dma.vmem_to_hbm [thread:$0]  %s206, 256, %s6, [#allocation4], 128, 128, 8
    $region41: #{tpu_custom_call.1} parent=1 // pred_fallthru
      _
    // Predicated region
    $region42: #{tpu_custom_call.1} parent=1 // pred_check
      _
    $region43: #{tpu_custom_call.1} parent=1 // pred_check_branch
      %213 = sbr.rel (0) target = $region45
    $region44: #{tpu_custom_call.1} parent=1 // pred_region
      %214 = dma.done [#allocation4], 256
    $region45: #{tpu_custom_call.1} parent=1 // pred_fallthru
      _
    %215 = vsyncpa [#allocation3], 1
    %216 = vsyncpa [#allocation6], 1
    %217 = vsyncpa [#allocation4], 1

</llo_original>
